<compile_context>
chip_gen: v7x
topology: tpu7x:2x2x1
jax: 0.10.0
libtpu: 0.0.40
codegen_flags: <defaults>
</compile_context>

<pallas_src>
import functools

import jax
import jax.numpy as jnp
from jax import lax
from jax.experimental import pallas as pl
from jax.experimental.pallas import tpu as pltpu


def _nqa_kernel(k_ref, wk_ref, qpbd_ref, wp_ref, vec_ref, o_ref, *,
                batch_per_step, k_len, q_len, num_heads, hidden_dim, eps,
                compute_dtype):
    """One grid step: `batch_per_step` batch elements, all heads, full sequence."""
    bc, H, D = batch_per_step, num_heads, hidden_dim
    kx = k_ref[0]                                        # (bc*k_len, E)

    # 1) k projection, all heads fused: ONE (bc*k_len, E) x (E, H*D) MXU matmul.
    kp = jnp.dot(kx, wk_ref[...], preferred_element_type=jnp.float32)
    kp = kp.astype(compute_dtype)                        # cast once; no f32 copy kept

    # 2) scores for ALL heads / queries / batch rows in ONE matmul against the
    #    block-diagonal precomputed q projection: (bc*k_len, H*D) x (H*D, H*q_len).
    s = jnp.dot(kp, qpbd_ref[...], preferred_element_type=jnp.float32)
    s = s.reshape(bc, k_len, H * q_len)

    # 3) softmax over the key dim (dim=2 of 'bijn'); every lane is an independent
    #    (head, query) pair so one pass covers all heads. f32 math (v5e-safe);
    #    the reciprocal goes to the EUP slot.
    s = s - jnp.max(s, axis=1, keepdims=True)
    e = jnp.exp(s)
    p = e * pl.reciprocal(jnp.sum(e, axis=1, keepdims=True), approx=True)

    # 4) value side with the output projection folded in (associativity):
    #    v = projected k (v=None path), so sum_h p_h @ (kp_h @ Wp_h).
    acc = None
    for h in range(H):                                   # tiny static loop over heads
        kp_h = kp[:, h * D:(h + 1) * D]                  # (bc*k_len, D) lane slice
        vproj = jnp.dot(kp_h, wp_ref[h], preferred_element_type=jnp.float32)
        vproj = vproj.reshape(bc, k_len, -1)             # (bc, k_len, O) f32
        p_h = p[:, :, h * q_len:(h + 1) * q_len]         # (bc, k_len, q_len) f32
        if q_len == 1:
            # broadcast-multiply + sublane reduction: no one-row MXU pushes
            contrib = jnp.sum(p_h * vproj, axis=1, keepdims=True)       # (bc, 1, O)
        else:
            contrib = jnp.einsum(
                'bqk,bko->bqo',
                jnp.swapaxes(p_h, 1, 2).astype(compute_dtype),
                vproj.astype(compute_dtype),
                preferred_element_type=jnp.float32)                     # (bc, q_len, O)
        acc = contrib if acc is None else acc + contrib

    # 5) proj bias + LayerNorm + store once over the dense (bc*q_len, O) slab.
    proj_b, ln_w, ln_b = vec_ref[0], vec_ref[1], vec_ref[2]             # (1, O) each
    out = acc.reshape(bc * q_len, -1) + proj_b           # dropout(p=0) == identity
    mu = jnp.mean(out, axis=-1, keepdims=True)
    var = jnp.mean(jnp.square(out - mu), axis=-1, keepdims=True)
    out = (out - mu) * lax.rsqrt(var + eps)              # rsqrt -> EUP slot
    out = out * ln_w + ln_b
    o_ref[0] = out.astype(o_ref.dtype)                   # single dense store


def no_query_attention(k, params, *, num_heads, hidden_dim, eps=1e-6,
                       use_bf16=True, num_batch_chunks=None, vmem_limit_bytes=None):
    """NoQueryAttention forward. k: (B, k_len, E) float32 -> (B, q_len, O) float32.

    num_batch_chunks (G): batch is split into G grid steps ("parallel" axis).
    Default picks the largest divisor of B that is <= 4, giving the pipeline
    something to double-buffer and (on v7x) both TensorCores work. For v7x also
    consider vmem_limit_bytes so the per-step working set fits 64 MiB VMEM.
    """
    B, k_len, E = k.shape
    H, D = num_heads, hidden_dim
    q_param = params["q"]                                # (q_len, E)
    q_len = q_param.shape[0]
    O = params["proj_w"].shape[0]

    cdt = jnp.bfloat16 if use_bf16 else jnp.float32

    # --- hoisted, parameter-only q projection (computed once by XLA, in f32),
    #     laid out as a block-diagonal (H*D, H*q_len) matrix so in-kernel scores
    #     for all heads are a single matmul.
    qp = q_param @ params["wq_w"].T + params["wq_b"]                     # (q_len, H*D) f32
    qp_bd = jnp.einsum('ihd,hg->hdgi', qp.reshape(q_len, H, D),
                       jnp.eye(H, dtype=qp.dtype))
    qp_bd = qp_bd.reshape(H * D, H * q_len).astype(cdt)                  # (H*D, H*q_len)

    # --- wrapper-side layout plumbing (free): pre-transposed / per-head weights
    wk_t = params["wk_w"].T.astype(cdt)                                  # (E, H*D), heads fused
    wp_h = params["proj_w"].T.reshape(H, D, O).astype(cdt)               # (H, D, O)
    # pack the small per-feature vectors into one input (fewer DMA descriptors)
    vec = jnp.stack([params["proj_b"], params["ln_w"], params["ln_b"]])[:, None, :]  # (3,1,O) f32

    # --- batch chunking into G grid steps
    if num_batch_chunks is None:
        G = next(g for g in (4, 3, 2, 1) if B % g == 0)
    else:
        G = int(num_batch_chunks)
        assert B % G == 0, "batch must divide evenly into num_batch_chunks"
    bc = B // G
    # 3-D chunked layout: block trailing dims == full trailing dims, so the
    # (8, 128) BlockSpec divisibility constraint never triggers.
    k_chunks = k.reshape(G, bc * k_len, E).astype(cdt)

    kernel = functools.partial(_nqa_kernel, batch_per_step=bc, k_len=k_len,
                               q_len=q_len, num_heads=H, hidden_dim=D, eps=eps,
                               compute_dtype=cdt)

    full = lambda a: pl.BlockSpec(a.shape, lambda g: (0,) * a.ndim)

    cp_kwargs = dict(dimension_semantics=("parallel",))
    if vmem_limit_bytes is not None:
        cp_kwargs["vmem_limit_bytes"] = int(vmem_limit_bytes)

    # TODO(synk): for very long k_len, tile over kv with a flash-style
    # online-softmax accumulator instead of materializing full per-chunk scores;
    # unnecessary at these sizes.
    out = pl.pallas_call(
        kernel,
        out_shape=jax.ShapeDtypeStruct((G, bc * q_len, O), jnp.float32),
        grid=(G,),
        in_specs=[
            pl.BlockSpec((1, bc * k_len, E), lambda g: (g, 0, 0)),   # k, batch fused
            full(wk_t),                                              # fused-head Wk^T
            full(qp_bd),                                             # block-diag qp
            full(wp_h),                                              # per-head Wp
            full(vec),                                               # proj_b/ln_w/ln_b
        ],
        out_specs=pl.BlockSpec((1, bc * q_len, O), lambda g: (g, 0, 0)),
        compiler_params=pltpu.CompilerParams(**cp_kwargs),
    )(k_chunks, wk_t, qp_bd, wp_h, vec)

    return out.reshape(B, q_len, O)


def reference(k, params, *, num_heads, hidden_dim, eps=1e-6):
    """Pure-JAX f32 reference mirroring the PyTorch NoQueryAttention forward."""
    B, k_len, E = k.shape
    H, D = num_heads, hidden_dim
    q = jnp.broadcast_to(params["q"], (B,) + params["q"].shape)   # expand to batch
    q_len = q.shape[1]
    qp = q @ params["wq_w"].T + params["wq_b"]
    kp = k @ params["wk_w"].T
    qh = qp.reshape(B, q_len, H, D)
    kh = kp.reshape(B, k_len, H, D)
    vh = kh                                                        # v=None path
    attn = jnp.einsum("bind,bjnd->bijn", qh, kh)                   # unscaled dot_product
    attn = jax.nn.softmax(attn, axis=2)
    out = jnp.einsum("bijn,bjnd->bind", attn, vh).reshape(B, q_len, H * D)
    out = out @ params["proj_w"].T + params["proj_b"]
    mu = out.mean(-1, keepdims=True)
    var = ((out - mu) ** 2).mean(-1, keepdims=True)
    out = (out - mu) / jnp.sqrt(var + eps)
    return out * params["ln_w"] + params["ln_b"]


if __name__ == "__main__":
    # NoQueryAttention hyperparams: hidden_dim = embed_dim // num_heads,
    # output_dim = embed_dim, q_len = 1 (module default).
    embed_dim, num_heads = 32, 2
    hidden_dim = embed_dim // num_heads      # 16
    output_dim = embed_dim                   # 32
    q_len = 1
    B, k_len = 2, 8
    HD = num_heads * hidden_dim

    key = jax.random.PRNGKey(0)
    keys = jax.random.split(key, 8)

    def uniform(kk, shape, bound):
        return jax.random.uniform(kk, shape, jnp.float32, -bound, bound)

    params = {
        "q":      uniform(keys[0], (q_len, embed_dim), embed_dim ** -0.5),
        "wq_w":   uniform(keys[1], (HD, embed_dim), embed_dim ** -0.5),
        "wq_b":   uniform(keys[2], (HD,), embed_dim ** -0.5),
        "wk_w":   uniform(keys[3], (HD, embed_dim), embed_dim ** -0.5),
        "proj_w": uniform(keys[4], (output_dim, HD), HD ** -0.5),
        "proj_b": uniform(keys[5], (output_dim,), HD ** -0.5),
        "ln_w":   jnp.ones((output_dim,), jnp.float32),
        "ln_b":   jnp.zeros((output_dim,), jnp.float32),
    }
    # TODO(synk): w_v is unused on the v=None path (v = projected k), so it is omitted.

    k_in = jax.random.normal(keys[6], (B, k_len, embed_dim), jnp.float32)
    ref = reference(k_in, params, num_heads=num_heads, hidden_dim=hidden_dim)

    # f32-MXU path (tolerance covers the approximate EUP reciprocal in the softmax).
    out_f32 = jax.block_until_ready(
        no_query_attention(k_in, params, num_heads=num_heads, hidden_dim=hidden_dim,
                           use_bf16=False))
    assert out_f32.shape == (B, q_len, output_dim)
    assert jnp.allclose(out_f32, ref, atol=1e-2, rtol=1e-2), "f32 path mismatch vs reference"

    # bf16-MXU path (v5e/v6e/v7x native MXU dtype); looser tolerance for bf16 rounding.
    out_bf16 = jax.block_until_ready(
        no_query_attention(k_in, params, num_heads=num_heads, hidden_dim=hidden_dim,
                           use_bf16=True))
    assert out_bf16.shape == (B, q_len, output_dim)
    assert jnp.allclose(out_bf16, ref, atol=5e-2, rtol=5e-2), "bf16 path mismatch vs reference"

    print("KERNEL_OK")
</pallas_src>

<mosaic_0001>
module attributes {stable_mosaic.version = 11 : i64} {
  func.func @_nqa_kernel(%arg0: i32, %arg1: memref<1x8x32xf32, #tpu.memory_space<vmem>>, %arg2: memref<32x32xf32, #tpu.memory_space<vmem>>, %arg3: memref<32x2xf32, #tpu.memory_space<vmem>>, %arg4: memref<2x16x32xf32, #tpu.memory_space<vmem>>, %arg5: memref<3x1x32xf32, #tpu.memory_space<vmem>>, %arg6: memref<1x1x32xf32, #tpu.memory_space<vmem>>) attributes {dimension_semantics = [#tpu.dimension_semantics<parallel>], iteration_bounds = array<i64: 2>, scalar_prefetch = 0 : i64, scratch_operands = 0 : i64, tpu.core_type = #tpu.core_type<tc>, window_params = [{transform_indices = @transform_0, window_bounds = array<i64: 1, 8, 32>}, {pipeline_mode = #tpu.pipeline_mode<synchronous>, transform_indices = @transform_1, window_bounds = array<i64: 32, 32>}, {pipeline_mode = #tpu.pipeline_mode<synchronous>, transform_indices = @transform_2, window_bounds = array<i64: 32, 2>}, {pipeline_mode = #tpu.pipeline_mode<synchronous>, transform_indices = @transform_3, window_bounds = array<i64: 2, 16, 32>}, {pipeline_mode = #tpu.pipeline_mode<synchronous>, transform_indices = @transform_4, window_bounds = array<i64: 3, 1, 32>}, {transform_indices = @transform_5, window_bounds = array<i64: 1, 1, 32>}]} {
    %c0 = arith.constant 0 : index
    %c0_0 = arith.constant 0 : index
    %c0_1 = arith.constant 0 : index
    %0 = vector.load %arg1[%c0, %c0_0, %c0_1] : memref<1x8x32xf32, #tpu.memory_space<vmem>>, vector<1x8x32xf32>
    %1 = vector.shape_cast %0 : vector<1x8x32xf32> to vector<8x32xf32>
    %c0_2 = arith.constant 0 : index
    %c0_3 = arith.constant 0 : index
    %2 = vector.load %arg2[%c0_2, %c0_3] : memref<32x32xf32, #tpu.memory_space<vmem>>, vector<32x32xf32>
    %cst = arith.constant dense<0.000000e+00> : vector<8x32xf32>
    %3 = tpu.matmul %1, %2, %cst {dimension_numbers = #tpu.dot_dimension_numbers<[1], [0], [0], [1], [0, 0, 1, 1], [], []>} : vector<8x32xf32>, vector<32x32xf32>, vector<8x32xf32> -> vector<8x32xf32>
    %c0_4 = arith.constant 0 : index
    %c0_5 = arith.constant 0 : index
    %4 = vector.load %arg3[%c0_4, %c0_5] : memref<32x2xf32, #tpu.memory_space<vmem>>, vector<32x2xf32>
    %cst_6 = arith.constant dense<0.000000e+00> : vector<8x2xf32>
    %5 = tpu.matmul %3, %4, %cst_6 {dimension_numbers = #tpu.dot_dimension_numbers<[1], [0], [0], [1], [0, 0, 1, 1], [], []>} : vector<8x32xf32>, vector<32x2xf32>, vector<8x2xf32> -> vector<8x2xf32>
    %6 = vector.shape_cast %5 : vector<8x2xf32> to vector<1x8x2xf32>
    %cst_7 = arith.constant dense<0xFF800000> : vector<1x2xf32>
    %7 = vector.multi_reduction <maximumf>, %6, %cst_7 [1] : vector<1x8x2xf32> to vector<1x2xf32>
    %8 = vector.shape_cast %7 : vector<1x2xf32> to vector<1x1x2xf32>
    %9 = vector.broadcast %8 : vector<1x1x2xf32> to vector<1x8x2xf32>
    %10 = arith.subf %6, %9 : vector<1x8x2xf32>
    %11 = math.exp %10 : vector<1x8x2xf32>
    %cst_8 = arith.constant dense<0.000000e+00> : vector<1x2xf32>
    %12 = vector.multi_reduction <add>, %11, %cst_8 [1] : vector<1x8x2xf32> to vector<1x2xf32>
    %13 = vector.shape_cast %12 : vector<1x2xf32> to vector<1x1x2xf32>
    %14 = tpu.reciprocal %13 {approx = true} : vector<1x1x2xf32> -> vector<1x1x2xf32>
    %15 = vector.broadcast %14 : vector<1x1x2xf32> to vector<1x8x2xf32>
    %16 = arith.mulf %11, %15 : vector<1x8x2xf32>
    %17 = vector.extract_strided_slice %3 {offsets = [0, 0], sizes = [8, 16], strides = [1, 1]} : vector<8x32xf32> to vector<8x16xf32>
    %c0_9 = arith.constant 0 : index
    %c0_10 = arith.constant 0 : index
    %c0_11 = arith.constant 0 : index
    %18 = vector.load %arg4[%c0_9, %c0_10, %c0_11] : memref<2x16x32xf32, #tpu.memory_space<vmem>>, vector<1x16x32xf32>
    %19 = vector.shape_cast %18 : vector<1x16x32xf32> to vector<16x32xf32>
    %cst_12 = arith.constant dense<0.000000e+00> : vector<8x32xf32>
    %20 = tpu.matmul %17, %19, %cst_12 {dimension_numbers = #tpu.dot_dimension_numbers<[1], [0], [0], [1], [0, 0, 1, 1], [], []>} : vector<8x16xf32>, vector<16x32xf32>, vector<8x32xf32> -> vector<8x32xf32>
    %21 = vector.shape_cast %20 : vector<8x32xf32> to vector<1x8x32xf32>
    %22 = vector.extract_strided_slice %16 {offsets = [0, 0, 0], sizes = [1, 8, 1], strides = [1, 1, 1]} : vector<1x8x2xf32> to vector<1x8x1xf32>
    %23 = vector.broadcast %22 : vector<1x8x1xf32> to vector<1x8x32xf32>
    %24 = arith.mulf %23, %21 : vector<1x8x32xf32>
    %cst_13 = arith.constant dense<0.000000e+00> : vector<1x32xf32>
    %25 = vector.multi_reduction <add>, %24, %cst_13 [1] : vector<1x8x32xf32> to vector<1x32xf32>
    %26 = vector.shape_cast %25 : vector<1x32xf32> to vector<1x1x32xf32>
    %27 = vector.extract_strided_slice %3 {offsets = [0, 16], sizes = [8, 16], strides = [1, 1]} : vector<8x32xf32> to vector<8x16xf32>
    %c1 = arith.constant 1 : index
    %c0_14 = arith.constant 0 : index
    %c0_15 = arith.constant 0 : index
    %28 = vector.load %arg4[%c1, %c0_14, %c0_15] : memref<2x16x32xf32, #tpu.memory_space<vmem>>, vector<1x16x32xf32>
    %29 = vector.shape_cast %28 : vector<1x16x32xf32> to vector<16x32xf32>
    %cst_16 = arith.constant dense<0.000000e+00> : vector<8x32xf32>
    %30 = tpu.matmul %27, %29, %cst_16 {dimension_numbers = #tpu.dot_dimension_numbers<[1], [0], [0], [1], [0, 0, 1, 1], [], []>} : vector<8x16xf32>, vector<16x32xf32>, vector<8x32xf32> -> vector<8x32xf32>
    %31 = vector.shape_cast %30 : vector<8x32xf32> to vector<1x8x32xf32>
    %32 = vector.extract_strided_slice %16 {offsets = [0, 0, 1], sizes = [1, 8, 1], strides = [1, 1, 1]} : vector<1x8x2xf32> to vector<1x8x1xf32>
    %33 = vector.broadcast %32 : vector<1x8x1xf32> to vector<1x8x32xf32>
    %34 = arith.mulf %33, %31 : vector<1x8x32xf32>
    %cst_17 = arith.constant dense<0.000000e+00> : vector<1x32xf32>
    %35 = vector.multi_reduction <add>, %34, %cst_17 [1] : vector<1x8x32xf32> to vector<1x32xf32>
    %36 = vector.shape_cast %35 : vector<1x32xf32> to vector<1x1x32xf32>
    %37 = arith.addf %26, %36 : vector<1x1x32xf32>
    %c0_18 = arith.constant 0 : index
    %c0_19 = arith.constant 0 : index
    %c0_20 = arith.constant 0 : index
    %38 = vector.load %arg5[%c0_18, %c0_19, %c0_20] : memref<3x1x32xf32, #tpu.memory_space<vmem>>, vector<1x1x32xf32>
    %39 = vector.shape_cast %38 : vector<1x1x32xf32> to vector<1x32xf32>
    %c1_21 = arith.constant 1 : index
    %c0_22 = arith.constant 0 : index
    %c0_23 = arith.constant 0 : index
    %40 = vector.load %arg5[%c1_21, %c0_22, %c0_23] : memref<3x1x32xf32, #tpu.memory_space<vmem>>, vector<1x1x32xf32>
    %41 = vector.shape_cast %40 : vector<1x1x32xf32> to vector<1x32xf32>
    %c2 = arith.constant 2 : index
    %c0_24 = arith.constant 0 : index
    %c0_25 = arith.constant 0 : index
    %42 = vector.load %arg5[%c2, %c0_24, %c0_25] : memref<3x1x32xf32, #tpu.memory_space<vmem>>, vector<1x1x32xf32>
    %43 = vector.shape_cast %42 : vector<1x1x32xf32> to vector<1x32xf32>
    %44 = vector.shape_cast %37 : vector<1x1x32xf32> to vector<1x32xf32>
    %45 = arith.addf %44, %39 : vector<1x32xf32>
    %cst_26 = arith.constant dense<0.000000e+00> : vector<1xf32>
    %46 = vector.multi_reduction <add>, %45, %cst_26 [1] : vector<1x32xf32> to vector<1xf32>
    %47 = vector.shape_cast %46 : vector<1xf32> to vector<1x1xf32>
    %cst_27 = arith.constant 3.200000e+01 : f32
    %48 = vector.broadcast %cst_27 : f32 to vector<1x1xf32>
    %49 = arith.divf %47, %48 : vector<1x1xf32>
    %50 = vector.broadcast %49 : vector<1x1xf32> to vector<1x32xf32>
    %51 = arith.subf %45, %50 : vector<1x32xf32>
    %52 = arith.mulf %51, %51 : vector<1x32xf32>
    %cst_28 = arith.constant dense<0.000000e+00> : vector<1xf32>
    %53 = vector.multi_reduction <add>, %52, %cst_28 [1] : vector<1x32xf32> to vector<1xf32>
    %54 = vector.shape_cast %53 : vector<1xf32> to vector<1x1xf32>
    %cst_29 = arith.constant 3.200000e+01 : f32
    %55 = vector.broadcast %cst_29 : f32 to vector<1x1xf32>
    %56 = arith.divf %54, %55 : vector<1x1xf32>
    %57 = vector.broadcast %49 : vector<1x1xf32> to vector<1x32xf32>
    %58 = arith.subf %45, %57 : vector<1x32xf32>
    %cst_30 = arith.constant 9.99999997E-7 : f32
    %59 = vector.broadcast %cst_30 : f32 to vector<1x1xf32>
    %60 = arith.addf %56, %59 : vector<1x1xf32>
    %61 = math.rsqrt %60 : vector<1x1xf32>
    %62 = vector.broadcast %61 : vector<1x1xf32> to vector<1x32xf32>
    %63 = arith.mulf %58, %62 : vector<1x32xf32>
    %64 = arith.mulf %63, %41 : vector<1x32xf32>
    %65 = arith.addf %64, %43 : vector<1x32xf32>
    %c0_31 = arith.constant 0 : index
    %c0_32 = arith.constant 0 : index
    %c0_33 = arith.constant 0 : index
    %66 = vector.load %arg6[%c0_31, %c0_32, %c0_33] : memref<1x1x32xf32, #tpu.memory_space<vmem>>, vector<1x1x32xf32>
    %67 = vector.shape_cast %66 : vector<1x1x32xf32> to vector<1x32xf32>
    %68 = vector.shape_cast %65 : vector<1x32xf32> to vector<1x1x32xf32>
    tpu.vector_store %arg6[%c0_31, %c0_32, %c0_33], %68 {strides = array<i32>} : memref<1x1x32xf32, #tpu.memory_space<vmem>>, vector<1x1x32xf32>,
    return
  }
  func.func @transform_0(%arg0: i32) -> (i32, i32, i32) {
    %c0_i32 = arith.constant 0 : i32
    %c0_i32_0 = arith.constant 0 : i32
    %c0_i32_1 = arith.constant 0 : i32
    return %arg0, %c0_i32, %c0_i32_0 : i32, i32, i32
  }
  func.func @transform_1(%arg0: i32) -> (i32, i32) {
    %c0_i32 = arith.constant 0 : i32
    %c0_i32_0 = arith.constant 0 : i32
    %c0_i32_1 = arith.constant 0 : i32
    return %c0_i32, %c0_i32_0 : i32, i32
  }
  func.func @transform_2(%arg0: i32) -> (i32, i32) {
    %c0_i32 = arith.constant 0 : i32
    %c0_i32_0 = arith.constant 0 : i32
    %c0_i32_1 = arith.constant 0 : i32
    return %c0_i32, %c0_i32_0 : i32, i32
  }
  func.func @transform_3(%arg0: i32) -> (i32, i32, i32) {
    %c0_i32 = arith.constant 0 : i32
    %c0_i32_0 = arith.constant 0 : i32
    %c0_i32_1 = arith.constant 0 : i32
    %c0_i32_2 = arith.constant 0 : i32
    return %c0_i32, %c0_i32_0, %c0_i32_1 : i32, i32, i32
  }
  func.func @transform_4(%arg0: i32) -> (i32, i32, i32) {
    %c0_i32 = arith.constant 0 : i32
    %c0_i32_0 = arith.constant 0 : i32
    %c0_i32_1 = arith.constant 0 : i32
    %c0_i32_2 = arith.constant 0 : i32
    return %c0_i32, %c0_i32_0, %c0_i32_1 : i32, i32, i32
  }
  func.func @transform_5(%arg0: i32) -> (i32, i32, i32) {
    %c0_i32 = arith.constant 0 : i32
    %c0_i32_0 = arith.constant 0 : i32
    %c0_i32_1 = arith.constant 0 : i32
    return %arg0, %c0_i32, %c0_i32_0 : i32, i32, i32
  }
}

</mosaic_0001>

<llo_original>
// kernel: tpu_custom_call.1
$region0: #{tpu_custom_call.1}
  #allocation0 [shape = 'u32[]', space=smem, size = 0x4, offset = 0x4, fixed_abs, tag = 'smem constant byte address 0x4 - core index']
  #allocation1 [shape = 'u32[144,128]{1,0:T(1,128)}', space=vmem, size = 0x12000, scoped, tag = 'internal scratch']
  %s0 = inlined_call_operand.hbm [shape: f32[2,8,32], index: 0, kind: input, shape index: {}]
  %s1 = inlined_call_operand.vmem [shape: f32[32,32], index: 1, kind: input, shape index: {}]
  %s2 = inlined_call_operand.vmem [shape: f32[32,2], index: 2, kind: input, shape index: {}]
  %s3 = inlined_call_operand.hbm [shape: f32[2,16,32], index: 3, kind: input, shape index: {}]
  %s4 = inlined_call_operand.vmem [shape: f32[3,1,32], index: 4, kind: input, shape index: {}]
  %s5 = inlined_call_operand.hbm [shape: f32[2,1,32], index: 5, kind: output, shape index: {}]
  %s6 = sld [smem:[#allocation0]]
  $region61: #{tpu_custom_call.1} parent=0
    _
  %s8 = ssub.s32 1, %s6
  %s9 = scalar_select 0, %s8, %s6
  $region1: #{tpu_custom_call.1} parent=0
    #allocation2 [shape = 'u8[8192]{0}', space=vmem, size = 0x2000, scoped, tag = 'input window, operand 0']
    #allocation3 [shape = 's32[2]{0}', space=sflag, size = 0x8, scoped, tag = 'scoped memory for tpu_custom_call.1']
    #allocation4 [shape = 's32[2]{0}', space=sflag, size = 0x8, scoped, tag = 'scoped memory for tpu_custom_call.1']
    #allocation5 [shape = 'u8[16384]{0}', space=vmem, size = 0x4000, scoped, tag = 'input window, operand 3, single buffered']
    #allocation6 [shape = 's32[1]{0}', space=sflag, size = 0x4, scoped, tag = 'scoped memory for tpu_custom_call.1']
    #allocation7 [shape = 'u8[1024]{0}', space=vmem, size = 0x400, scoped, tag = 'output window, operand 0']
    %10 = vsyncpa [#allocation3], 0
    %s11 = scalar_lea.sflag [#allocation3], 1
    %12 = vsyncpa %s11, 0
    %13 = vsyncpa [#allocation6], 0
    %14 = vsyncpa [#allocation4], 0
    %s15 = scalar_lea.sflag [#allocation4], 1
    %16 = vsyncpa %s15, 0
    loop: start=0, step=1, limit=4
    $region2: #{tpu_custom_call.1} parent=1 // loop_pre_header
      _
    $region3: #{tpu_custom_call.1} parent=1 // loop_header
      %s18 = sphi 0, %s22
      %p19 = scmp.ge.s32.totalorder %s18, 4
      %s28 = sphi 0, %s30
      %s31 = sphi 0, %s28
      %s32 = sphi 0, %s31
      %s48 = sphi 0, %s32
      %s52 = sphi 0, %s52
      %s54 = sphi 0, %s52
      %s55 = sphi 0, %s54
      %s69 = sphi 0, %s55
      %s73 = sphi 0, %s73
      %s75 = sphi 0, %s73
      %s76 = sphi 0, %s75
      %s90 = sphi 0, %s76
      %s94 = sphi 0, %s94
      %s96 = sphi 0, %s94
      %s97 = sphi 0, %s96
      %s111 = sphi 0, %s97
      %s115 = sphi 0, %s115
      %s117 = sphi 0, %s115
      %s118 = sphi 0, %s117
      %s132 = sphi 0, %s118
      %s138 = sphi 0, %s140
      %s141 = sphi 0, %s138
      %s142 = sphi 0, %s141
      %s158 = sphi 0, %s142
    $region4: #{tpu_custom_call.1} parent=1 // loop_header_branch
      %21 = sbr.rel (%p19) target = $region8
    $region5: #{tpu_custom_call.1} parent=1 // loop_body
      %s23 = ssub.s32 %s18, 1
      %s24 = ssub.s32 %s18, 2
      %s25 = sadd.s32 %s18, 1
      %s26 = ssub.s32 %s18, %s25
      %p27 = scmp.eq.s32.totalorder %s26, 0
      %s29 = sadd.s32 %s28, 1
      %s30 = scalar_select %p27, %s28, %s29
      %p33 = pneg %p27
      %p34 = scmp.eq.s32.totalorder %s18, 1
      %p35 = por %p33, %p34
      %p36 = scmp.ne.s32.totalorder %s28, %s31
      %p37 = scmp.eq.s32.totalorder %s18, 0
      %p38 = por %p36, %p37
      %p39 = scmp.ne.s32.totalorder %s28, %s31
      %p40 = scmp.eq.s32.totalorder %s23, 1
      %p41 = por %p39, %p40
      %p42 = scmp.ne.s32.totalorder %s31, %s32
      %p43 = scmp.eq.s32.totalorder %s23, 0
      %p44 = por %p42, %p43
      %p45 = scmp.ne.s32.totalorder %s31, %s32
      %p46 = scmp.eq.s32.totalorder %s24, 1
      %p47 = por %p45, %p46
      %p49 = scmp.ne.s32.totalorder %s32, %s48
      %p50 = scmp.eq.s32.totalorder %s24, 0
      %p51 = por %p49, %p50
      %s53 = sadd.s32 %s52, 1
      %p56 = scmp.eq.s32.totalorder %s18, 1
      %p57 = scmp.ne.s32.totalorder %s52, %s54
      %p58 = scmp.eq.s32.totalorder %s18, 0
      %p59 = por %p57, %p58
      %p60 = scmp.ne.s32.totalorder %s52, %s54
      %p61 = scmp.eq.s32.totalorder %s23, 1
      %p62 = por %p60, %p61
      %p63 = scmp.ne.s32.totalorder %s54, %s55
      %p64 = scmp.eq.s32.totalorder %s23, 0
      %p65 = por %p63, %p64
      %p66 = scmp.ne.s32.totalorder %s54, %s55
      %p67 = scmp.eq.s32.totalorder %s24, 1
      %p68 = por %p66, %p67
      %p70 = scmp.ne.s32.totalorder %s55, %s69
      %p71 = scmp.eq.s32.totalorder %s24, 0
      %p72 = por %p70, %p71
      %s74 = sadd.s32 %s73, 1
      %p77 = scmp.eq.s32.totalorder %s18, 1
      %p78 = scmp.ne.s32.totalorder %s73, %s75
      %p79 = scmp.eq.s32.totalorder %s18, 0
      %p80 = por %p78, %p79
      %p81 = scmp.ne.s32.totalorder %s73, %s75
      %p82 = scmp.eq.s32.totalorder %s23, 1
      %p83 = por %p81, %p82
      %p84 = scmp.ne.s32.totalorder %s75, %s76
      %p85 = scmp.eq.s32.totalorder %s23, 0
      %p86 = por %p84, %p85
      %p87 = scmp.ne.s32.totalorder %s75, %s76
      %p88 = scmp.eq.s32.totalorder %s24, 1
      %p89 = por %p87, %p88
      %p91 = scmp.ne.s32.totalorder %s76, %s90
      %p92 = scmp.eq.s32.totalorder %s24, 0
      %p93 = por %p91, %p92
      %s95 = sadd.s32 %s94, 1
      %p98 = scmp.eq.s32.totalorder %s18, 1
      %p99 = scmp.ne.s32.totalorder %s94, %s96
      %p100 = scmp.eq.s32.totalorder %s18, 0
      %p101 = por %p99, %p100
      %p102 = scmp.ne.s32.totalorder %s94, %s96
      %p103 = scmp.eq.s32.totalorder %s23, 1
      %p104 = por %p102, %p103
      %p105 = scmp.ne.s32.totalorder %s96, %s97
      %p106 = scmp.eq.s32.totalorder %s23, 0
      %p107 = por %p105, %p106
      %p108 = scmp.ne.s32.totalorder %s96, %s97
      %p109 = scmp.eq.s32.totalorder %s24, 1
      %p110 = por %p108, %p109
      %p112 = scmp.ne.s32.totalorder %s97, %s111
      %p113 = scmp.eq.s32.totalorder %s24, 0
      %p114 = por %p112, %p113
      %s116 = sadd.s32 %s115, 1
      %p119 = scmp.eq.s32.totalorder %s18, 1
      %p120 = scmp.ne.s32.totalorder %s115, %s117
      %p121 = scmp.eq.s32.totalorder %s18, 0
      %p122 = por %p120, %p121
      %p123 = scmp.ne.s32.totalorder %s115, %s117
      %p124 = scmp.eq.s32.totalorder %s23, 1
      %p125 = por %p123, %p124
      %p126 = scmp.ne.s32.totalorder %s117, %s118
      %p127 = scmp.eq.s32.totalorder %s23, 0
      %p128 = por %p126, %p127
      %p129 = scmp.ne.s32.totalorder %s117, %s118
      %p130 = scmp.eq.s32.totalorder %s24, 1
      %p131 = por %p129, %p130
      %p133 = scmp.ne.s32.totalorder %s118, %s132
      %p134 = scmp.eq.s32.totalorder %s24, 0
      %p135 = por %p133, %p134
      %s136 = ssub.s32 %s18, %s25
      %p137 = scmp.eq.s32.totalorder %s136, 0
      %s139 = sadd.s32 %s138, 1
      %s140 = scalar_select %p137, %s138, %s139
      %p143 = pneg %p137
      %p144 = scmp.eq.s32.totalorder %s18, 1
      %p145 = por %p143, %p144
      %p146 = scmp.ne.s32.totalorder %s138, %s141
      %p147 = scmp.eq.s32.totalorder %s18, 0
      %p148 = por %p146, %p147
      %p149 = scmp.ne.s32.totalorder %s138, %s141
      %p150 = scmp.eq.s32.totalorder %s23, 1
      %p151 = por %p149, %p150
      %p152 = scmp.ne.s32.totalorder %s141, %s142
      %p153 = scmp.eq.s32.totalorder %s23, 0
      %p154 = por %p152, %p153
      %p155 = scmp.ne.s32.totalorder %s141, %s142
      %p156 = scmp.eq.s32.totalorder %s24, 1
      %p157 = por %p155, %p156
      %p159 = scmp.ne.s32.totalorder %s142, %s158
      %p160 = scmp.eq.s32.totalorder %s24, 0
      %p161 = por %p159, %p160
      %p162 = scmp.le.s32.totalorder 1, %s18
      %p163 = scmp.lt.s32.totalorder %s18, 3
      %p164 = pnand %p162, %p163
      %p165 = pneg %p164
      // Predicated region
      $region9: #{tpu_custom_call.1} parent=5 // pred_check
        _
      $region10: #{tpu_custom_call.1} parent=5 // pred_check_branch
        %167 = sbr.rel (%p164) target = $region12
      $region11: #{tpu_custom_call.1} parent=5 // pred_region
        %s168 = ssub.s32 %s18, 1
        // Predicated region
        $region13: #{tpu_custom_call.1} parent=11 // pred_check
          %p169 = pneg %p65
        $region14: #{tpu_custom_call.1} parent=11 // pred_check_branch
          %171 = sbr.rel (%p169) target = $region16
        $region15: #{tpu_custom_call.1} parent=11 // pred_region
          _
        $region16: #{tpu_custom_call.1} parent=11 // pred_fallthru
          _
        // Predicated region
        $region17: #{tpu_custom_call.1} parent=11 // pred_check
          %p172 = pneg %p86
        $region18: #{tpu_custom_call.1} parent=11 // pred_check_branch
          %174 = sbr.rel (%p172) target = $region20
        $region19: #{tpu_custom_call.1} parent=11 // pred_region
          _
        $region20: #{tpu_custom_call.1} parent=11 // pred_fallthru
          _
        // Predicated region
        $region21: #{tpu_custom_call.1} parent=11 // pred_check
          %p175 = pneg %p107
        $region22: #{tpu_custom_call.1} parent=11 // pred_check_branch
          %177 = sbr.rel (%p175) target = $region24
        $region23: #{tpu_custom_call.1} parent=11 // pred_region
          %s179 = ssub.s32 512, 512
          %180 = vsyncadd [#allocation6], %s179
          %s181 = sshll.u32 [#allocation5], 4
          %s182 = int_to_ptr.vmem [resolvable:$true] %s181
          %187 = dma.hbm_to_vmem [thread:$0]  %s3, 512, %s182, [#allocation6], 128, 128, 8
        $region24: #{tpu_custom_call.1} parent=11 // pred_fallthru
          _
        // Predicated region
        $region25: #{tpu_custom_call.1} parent=11 // pred_check
          %p188 = pneg %p128
        $region26: #{tpu_custom_call.1} parent=11 // pred_check_branch
          %190 = sbr.rel (%p188) target = $region28
        $region27: #{tpu_custom_call.1} parent=11 // pred_region
          _
        $region28: #{tpu_custom_call.1} parent=11 // pred_fallthru
          _
      $region12: #{tpu_custom_call.1} parent=5 // pred_fallthru
        _
      %p191 = scmp.lt.s32.totalorder %s18, 2
      // Predicated region
      $region29: #{tpu_custom_call.1} parent=5 // pred_check
        %p192 = pneg %p191
      $region30: #{tpu_custom_call.1} parent=5 // pred_check_branch
        %194 = sbr.rel (%p192) target = $region32
      $region31: #{tpu_custom_call.1} parent=5 // pred_region
        // Predicated region
        $region33: #{tpu_custom_call.1} parent=31 // pred_check
          %p195 = pneg %p38
        $region34: #{tpu_custom_call.1} parent=31 // pred_check_branch
          %197 = sbr.rel (%p195) target = $region36
        $region35: #{tpu_custom_call.1} parent=31 // pred_region
          %s198 = sand.u32 %s28, 1
          %s199 = scalar_lea.sflag [#allocation3], %s198
          %s200 = sand.u32 %s28, 1
          %s201 = smul.addr %s200, 8
          %s202 = scalar_lea.vmem [#allocation2], %s201
          %s204 = ssub.s32 128, 128
          %205 = vsyncadd %s199, %s204
          %s206 = smul.addr %s18, 128
          %s207 = scalar_lea.hbm %s0, %s206
          %s209 = sshll.u32 %s202, 4
          %s210 = int_to_ptr.vmem [resolvable:$true] %s209
          %212 = dma.hbm_to_vmem [thread:$0]  %s207, 128, %s210, %s199
        $region36: #{tpu_custom_call.1} parent=31 // pred_fallthru
          _
      $region32: #{tpu_custom_call.1} parent=5 // pred_fallthru
        _
      %p213 = scmp.le.s32.totalorder 1, %s18
      %p214 = scmp.lt.s32.totalorder %s18, 3
      %p215 = pnand %p213, %p214
      %p216 = pneg %p215
      // Predicated region
      $region37: #{tpu_custom_call.1} parent=5 // pred_check
        _
      $region38: #{tpu_custom_call.1} parent=5 // pred_check_branch
        %218 = sbr.rel (%p215) target = $region40
      $region39: #{tpu_custom_call.1} parent=5 // pred_region
        %s219 = ssub.s32 %s18, 1
        %s220 = sand.u32 %s31, 1
        %s221 = scalar_lea.sflag [#allocation3], %s220
        %s222 = sand.u32 %s31, 1
        %s223 = smul.addr %s222, 8
        %s224 = scalar_lea.vmem [#allocation2], %s223
        // Predicated region
        $region41: #{tpu_custom_call.1} parent=39 // pred_check
          %p225 = pneg %p44
        $region42: #{tpu_custom_call.1} parent=39 // pred_check_branch
          %227 = sbr.rel (%p225) target = $region44
        $region43: #{tpu_custom_call.1} parent=39 // pred_region
          %228 = dma.done %s221, 128
        $region44: #{tpu_custom_call.1} parent=39 // pred_fallthru
          _
        // Predicated region
        $region45: #{tpu_custom_call.1} parent=39 // pred_check
          %p229 = pneg %p107
        $region46: #{tpu_custom_call.1} parent=39 // pred_check_branch
          %231 = sbr.rel (%p229) target = $region48
        $region47: #{tpu_custom_call.1} parent=39 // pred_region
          %232 = dma.done [#allocation6], 512
        $region48: #{tpu_custom_call.1} parent=39 // pred_fallthru
          _
        %s233 = sand.u32 %s31, 1
        %s234 = scalar_lea.sflag [#allocation3], %s233
        %s235 = sand.u32 %s31, 1
        %s236 = smul.addr %s235, 8
        %s237 = scalar_lea.vmem [#allocation2], %s236
        %p238 = pneg %p44
        %p239 = pneg %p41
        %p240 = pneg %p65
        %p241 = pneg %p62
        %p242 = pneg %p86
        %p243 = pneg %p83
        %p244 = pneg %p107
        %p245 = pneg %p104
        %p246 = pneg %p128
        %p247 = pneg %p125
        %p248 = pneg %p154
        %p249 = pneg %p151
        %s250 = sand.u32 %s141, 1
        %s251 = scalar_lea.sflag [#allocation4], %s250
        %s252 = sand.u32 %s141, 1
        %s253 = scalar_lea.vmem [#allocation7], %s252
        %v254 = vld [vmem:[%s224] sm:$0xff]
        %v255 = vld [vmem:[%s1] sm:$0xff]
        %v256 = vld [vmem:[%s1 + $0x8] sm:$0xff]
        %v257 = vld [vmem:[%s1 + $0x10] sm:$0xff]
        %v258 = vld [vmem:[%s1 + $0x18] sm:$0xff]
        %vm259 = vcmask 261120
        %v261 = vsel %vm259, %v254, 0
        %263 = vmatprep.subr.mxu0 0.0
        %264 = vmatpush1.msra.mxu0 %v255
        %265 = vmatprep.subr.mxu0 0.0
        %266 = vmatpush1.msra.mxu0 %v256
        %267 = vmatprep.subr.mxu0 0.0
        %268 = vmatpush1.msra.mxu0 %v257
        %269 = vmatprep.subr.mxu0 0.0
        %270 = vmatpush1.msra.mxu0 %v258
        %271 = vmatprep.subr.mxu0 0.0
        %272 = vmatpush1.msra.mxu0 0.0
        %273 = vmatprep.subr.mxu0 0.0
        %274 = vmatpush1.msra.mxu0 0.0
        %275 = vmatprep.subr.mxu0 0.0
        %276 = vmatpush1.msra.mxu0 0.0
        %277 = vmatprep.subr.mxu0 0.0
        %278 = vmatpush1.msra.mxu0 0.0
        %279 = vmatprep.subr.mxu0 0.0
        %280 = vmatpush1.msra.mxu0 0.0
        %281 = vmatprep.subr.mxu0 0.0
        %282 = vmatpush1.msra.mxu0 0.0
        %283 = vmatprep.subr.mxu0 0.0
        %284 = vmatpush1.msra.mxu0 0.0
        %285 = vmatprep.subr.mxu0 0.0
        %286 = vmatpush1.msra.mxu0 0.0
        %287 = vmatprep.subr.mxu0 0.0
        %288 = vmatpush1.msra.mxu0 0.0
        %289 = vmatprep.subr.mxu0 0.0
        %290 = vmatpush1.msra.mxu0 0.0
        %291 = vmatprep.subr.mxu0 0.0
        %292 = vmatpush1.msra.mxu0 0.0
        %293 = vmatprep.subr.mxu0 0.0
        %294 = vmatpush1.msra.mxu0 0.0
        %295 = vmatprep.subr.mxu0 0.0
        %296 = vmatpush1.msra.mxu0 0.0
        %297 = vmatprep.subr.mxu0 0.0
        %298 = vmatpush1.msra.mxu0 0.0
        %299 = vmatprep.subr.mxu0 0.0
        %300 = vmatpush1.msra.mxu0 0.0
        %301 = vmatprep.subr.mxu0 0.0
        %302 = vmatpush1.msra.mxu0 0.0
        %303 = vmatprep.subr.mxu0 0.0
        %304 = vmatpush1.msra.mxu0 0.0
        %305 = vmatprep.subr.mxu0 0.0
        %306 = vmatpush1.msra.mxu0 0.0
        %307 = vmatprep.subr.mxu0 0.0
        %308 = vmatpush1.msra.mxu0 0.0
        %309 = vmatprep.subr.mxu0 0.0
        %310 = vmatpush1.msra.mxu0 0.0
        %311 = vmatprep.subr.mxu0 0.0
        %312 = vmatpush1.msra.mxu0 0.0
        %313 = vmatprep.subr.mxu0 0.0
        %314 = vmatpush1.msra.mxu0 0.0
        %315 = vmatprep.subr.mxu0 0.0
        %316 = vmatpush1.msra.mxu0 0.0
        %317 = vmatprep.subr.mxu0 0.0
        %318 = vmatpush1.msra.mxu0 0.0
        %319 = vmatprep.subr.mxu0 0.0
        %320 = vmatpush1.msra.mxu0 0.0
        %321 = vmatprep.subr.mxu0 0.0
        %322 = vmatpush1.msra.mxu0 0.0
        %323 = vmatprep.subr.mxu0 0.0
        %324 = vmatpush1.msra.mxu0 0.0
        %325 = vmatprep.subr.mxu0 0.0
        %326 = vmatpush1.msra.mxu0 0.0
        %327 = vmatprep.mubr.f32.mxu0 0.0
        %328 = vmatmul.mubr.f32.gmra.mrb[0].mxu0 %v261
        %v329 = vpop.f32.mrb[0].mxu0
        %v330 = vadd.f32 0.0, %v329
        %v331 = vpop.f32.mrb[0].mxu0
        %332 = vdwg.mxu0
        %v333 = vld [vmem:[%s2] sm:$0xff]
        %v334 = vld [vmem:[%s2 + $0x8] sm:$0xff]
        %v335 = vld [vmem:[%s2 + $0x10] sm:$0xff]
        %v336 = vld [vmem:[%s2 + $0x18] sm:$0xff]
        %v338 = vsel %vm259, %v330, 0
        %340 = vmatprep.subr.mxu0 0.0
        %341 = vmatpush1.msra.mxu0 %v333
        %342 = vmatprep.subr.mxu0 0.0
        %343 = vmatpush1.msra.mxu0 %v334
        %344 = vmatprep.subr.mxu0 0.0
        %345 = vmatpush1.msra.mxu0 %v335
        %346 = vmatprep.subr.mxu0 0.0
        %347 = vmatpush1.msra.mxu0 %v336
        %348 = vmatprep.subr.mxu0 0.0
        %349 = vmatpush1.msra.mxu0 0.0
        %350 = vmatprep.subr.mxu0 0.0
        %351 = vmatpush1.msra.mxu0 0.0
        %352 = vmatprep.subr.mxu0 0.0
        %353 = vmatpush1.msra.mxu0 0.0
        %354 = vmatprep.subr.mxu0 0.0
        %355 = vmatpush1.msra.mxu0 0.0
        %356 = vmatprep.subr.mxu0 0.0
        %357 = vmatpush1.msra.mxu0 0.0
        %358 = vmatprep.subr.mxu0 0.0
        %359 = vmatpush1.msra.mxu0 0.0
        %360 = vmatprep.subr.mxu0 0.0
        %361 = vmatpush1.msra.mxu0 0.0
        %362 = vmatprep.subr.mxu0 0.0
        %363 = vmatpush1.msra.mxu0 0.0
        %364 = vmatprep.subr.mxu0 0.0
        %365 = vmatpush1.msra.mxu0 0.0
        %366 = vmatprep.subr.mxu0 0.0
        %367 = vmatpush1.msra.mxu0 0.0
        %368 = vmatprep.subr.mxu0 0.0
        %369 = vmatpush1.msra.mxu0 0.0
        %370 = vmatprep.subr.mxu0 0.0
        %371 = vmatpush1.msra.mxu0 0.0
        %372 = vmatprep.subr.mxu0 0.0
        %373 = vmatpush1.msra.mxu0 0.0
        %374 = vmatprep.subr.mxu0 0.0
        %375 = vmatpush1.msra.mxu0 0.0
        %376 = vmatprep.subr.mxu0 0.0
        %377 = vmatpush1.msra.mxu0 0.0
        %378 = vmatprep.subr.mxu0 0.0
        %379 = vmatpush1.msra.mxu0 0.0
        %380 = vmatprep.subr.mxu0 0.0
        %381 = vmatpush1.msra.mxu0 0.0
        %382 = vmatprep.subr.mxu0 0.0
        %383 = vmatpush1.msra.mxu0 0.0
        %384 = vmatprep.subr.mxu0 0.0
        %385 = vmatpush1.msra.mxu0 0.0
        %386 = vmatprep.subr.mxu0 0.0
        %387 = vmatpush1.msra.mxu0 0.0
        %388 = vmatprep.subr.mxu0 0.0
        %389 = vmatpush1.msra.mxu0 0.0
        %390 = vmatprep.subr.mxu0 0.0
        %391 = vmatpush1.msra.mxu0 0.0
        %392 = vmatprep.subr.mxu0 0.0
        %393 = vmatpush1.msra.mxu0 0.0
        %394 = vmatprep.subr.mxu0 0.0
        %395 = vmatpush1.msra.mxu0 0.0
        %396 = vmatprep.subr.mxu0 0.0
        %397 = vmatpush1.msra.mxu0 0.0
        %398 = vmatprep.subr.mxu0 0.0
        %399 = vmatpush1.msra.mxu0 0.0
        %400 = vmatprep.subr.mxu0 0.0
        %401 = vmatpush1.msra.mxu0 0.0
        %402 = vmatprep.subr.mxu0 0.0
        %403 = vmatpush1.msra.mxu0 0.0
        %404 = vmatprep.mubr.f32.mxu0 0.0
        %405 = vmatmul.mubr.f32.gmra.mrb[0].mxu0 %v338
        %v406 = vpop.f32.mrb[0].mxu0
        %v407 = vadd.f32 0.0, %v406
        %v408 = vpop.f32.mrb[0].mxu0
        %409 = vdwg.mxu0
        %vm410 = vcmask 15360
        %v411 = vsel %vm410, %v407, -inf
        %v412 = vrot.slane %v411, 4
        %v413 = vmax.f32 %v411, %v412
        %v414 = vrot.slane %v413, 2
        %v415 = vmax.f32 %v413, %v414
        %v416 = vrot.slane %v415, 1
        %v417 = vmax.f32 %v415, %v416
        %v418 = vsub.f32 %v407, %v417
        %v419 = vmul.f32 %v418, 1.442695
        %v420 = vpow.pop %v419
        %v421 = vsel %vm410, %v420, 0.0
        %v422 = vrot.slane %v421, 4
        %v423 = vadd.f32 %v421, %v422
        %v424 = vrot.slane %v423, 2
        %v425 = vadd.f32 %v423, %v424
        %v426 = vrot.slane %v425, 1
        %v427 = vadd.f32 %v425, %v426
        %v428 = vrcp.pop %v427
        %v429 = vmul.f32 %v420, %v428
        %v430 = vld [vmem:[#allocation5] sm:$0xff]
        %v431 = vld [vmem:[#allocation5 + $0x8] sm:$0xff]
        %vm432 = vcmask 130048
        %v433 = vsel %vm432, %v330, 0
        %435 = vmatprep.subr.mxu0 0.0
        %436 = vmatpush1.msra.mxu0 %v430
        %437 = vmatprep.subr.mxu0 0.0
        %438 = vmatpush1.msra.mxu0 %v431
        %439 = vmatprep.subr.mxu0 0.0
        %440 = vmatpush1.msra.mxu0 0.0
        %441 = vmatprep.subr.mxu0 0.0
        %442 = vmatpush1.msra.mxu0 0.0
        %443 = vmatprep.subr.mxu0 0.0
        %444 = vmatpush1.msra.mxu0 0.0
        %445 = vmatprep.subr.mxu0 0.0
        %446 = vmatpush1.msra.mxu0 0.0
        %447 = vmatprep.subr.mxu0 0.0
        %448 = vmatpush1.msra.mxu0 0.0
        %449 = vmatprep.subr.mxu0 0.0
        %450 = vmatpush1.msra.mxu0 0.0
        %451 = vmatprep.subr.mxu0 0.0
        %452 = vmatpush1.msra.mxu0 0.0
        %453 = vmatprep.subr.mxu0 0.0
        %454 = vmatpush1.msra.mxu0 0.0
        %455 = vmatprep.subr.mxu0 0.0
        %456 = vmatpush1.msra.mxu0 0.0
        %457 = vmatprep.subr.mxu0 0.0
        %458 = vmatpush1.msra.mxu0 0.0
        %459 = vmatprep.subr.mxu0 0.0
        %460 = vmatpush1.msra.mxu0 0.0
        %461 = vmatprep.subr.mxu0 0.0
        %462 = vmatpush1.msra.mxu0 0.0
        %463 = vmatprep.subr.mxu0 0.0
        %464 = vmatpush1.msra.mxu0 0.0
        %465 = vmatprep.subr.mxu0 0.0
        %466 = vmatpush1.msra.mxu0 0.0
        %467 = vmatprep.subr.mxu0 0.0
        %468 = vmatpush1.msra.mxu0 0.0
        %469 = vmatprep.subr.mxu0 0.0
        %470 = vmatpush1.msra.mxu0 0.0
        %471 = vmatprep.subr.mxu0 0.0
        %472 = vmatpush1.msra.mxu0 0.0
        %473 = vmatprep.subr.mxu0 0.0
        %474 = vmatpush1.msra.mxu0 0.0
        %475 = vmatprep.subr.mxu0 0.0
        %476 = vmatpush1.msra.mxu0 0.0
        %477 = vmatprep.subr.mxu0 0.0
        %478 = vmatpush1.msra.mxu0 0.0
        %479 = vmatprep.subr.mxu0 0.0
        %480 = vmatpush1.msra.mxu0 0.0
        %481 = vmatprep.subr.mxu0 0.0
        %482 = vmatpush1.msra.mxu0 0.0
        %483 = vmatprep.subr.mxu0 0.0
        %484 = vmatpush1.msra.mxu0 0.0
        %485 = vmatprep.subr.mxu0 0.0
        %486 = vmatpush1.msra.mxu0 0.0
        %487 = vmatprep.subr.mxu0 0.0
        %488 = vmatpush1.msra.mxu0 0.0
        %489 = vmatprep.subr.mxu0 0.0
        %490 = vmatpush1.msra.mxu0 0.0
        %491 = vmatprep.subr.mxu0 0.0
        %492 = vmatpush1.msra.mxu0 0.0
        %493 = vmatprep.subr.mxu0 0.0
        %494 = vmatpush1.msra.mxu0 0.0
        %495 = vmatprep.subr.mxu0 0.0
        %496 = vmatpush1.msra.mxu0 0.0
        %497 = vmatprep.subr.mxu0 0.0
        %498 = vmatpush1.msra.mxu0 0.0
        %499 = vmatprep.mubr.f32.mxu0 0.0
        %500 = vmatmul.mubr.f32.gmra.mrb[0].mxu0 %v433
        %v501 = vpop.f32.mrb[0].mxu0
        %v502 = vadd.f32 0.0, %v501
        %v503 = vpop.f32.mrb[0].mxu0
        %504 = vdwg.mxu0
        %506 = vset.pattern.permute.xlu0 0
        %507 = vperm.xlu0 %506, %v429
        %v508 = vpop.permute.xlu0 %507
        %v510 = vmul.f32 %v508, %v502
        %v511 = vsel %vm259, %v510, 0.0
        %v512 = vrot.slane %v511, 4
        %v513 = vadd.f32 %v511, %v512
        %v514 = vrot.slane %v513, 2
        %v515 = vadd.f32 %v513, %v514
        %v516 = vrot.slane %v515, 1
        %v517 = vadd.f32 %v515, %v516
        %s518 = scalar_lea.vmem [#allocation5], 16
        %v519 = vld [vmem:[%s518] sm:$0xff]
        %v520 = vld [vmem:[%s518 + $0x8] sm:$0xff]
        %521 = vrot.lane.b32.xlu0 %v330, 112
        %v522 = vpop.permute.xlu0 %521
        %v523 = vsel %vm432, %v522, 0
        %525 = vmatprep.subr.mxu0 0.0
        %526 = vmatpush1.msra.mxu0 %v519
        %527 = vmatprep.subr.mxu0 0.0
        %528 = vmatpush1.msra.mxu0 %v520
        %529 = vmatprep.subr.mxu0 0.0
        %530 = vmatpush1.msra.mxu0 0.0
        %531 = vmatprep.subr.mxu0 0.0
        %532 = vmatpush1.msra.mxu0 0.0
        %533 = vmatprep.subr.mxu0 0.0
        %534 = vmatpush1.msra.mxu0 0.0
        %535 = vmatprep.subr.mxu0 0.0
        %536 = vmatpush1.msra.mxu0 0.0
        %537 = vmatprep.subr.mxu0 0.0
        %538 = vmatpush1.msra.mxu0 0.0
        %539 = vmatprep.subr.mxu0 0.0
        %540 = vmatpush1.msra.mxu0 0.0
        %541 = vmatprep.subr.mxu0 0.0
        %542 = vmatpush1.msra.mxu0 0.0
        %543 = vmatprep.subr.mxu0 0.0
        %544 = vmatpush1.msra.mxu0 0.0
        %545 = vmatprep.subr.mxu0 0.0
        %546 = vmatpush1.msra.mxu0 0.0
        %547 = vmatprep.subr.mxu0 0.0
        %548 = vmatpush1.msra.mxu0 0.0
        %549 = vmatprep.subr.mxu0 0.0
        %550 = vmatpush1.msra.mxu0 0.0
        %551 = vmatprep.subr.mxu0 0.0
        %552 = vmatpush1.msra.mxu0 0.0
        %553 = vmatprep.subr.mxu0 0.0
        %554 = vmatpush1.msra.mxu0 0.0
        %555 = vmatprep.subr.mxu0 0.0
        %556 = vmatpush1.msra.mxu0 0.0
        %557 = vmatprep.subr.mxu0 0.0
        %558 = vmatpush1.msra.mxu0 0.0
        %559 = vmatprep.subr.mxu0 0.0
        %560 = vmatpush1.msra.mxu0 0.0
        %561 = vmatprep.subr.mxu0 0.0
        %562 = vmatpush1.msra.mxu0 0.0
        %563 = vmatprep.subr.mxu0 0.0
        %564 = vmatpush1.msra.mxu0 0.0
        %565 = vmatprep.subr.mxu0 0.0
        %566 = vmatpush1.msra.mxu0 0.0
        %567 = vmatprep.subr.mxu0 0.0
        %568 = vmatpush1.msra.mxu0 0.0
        %569 = vmatprep.subr.mxu0 0.0
        %570 = vmatpush1.msra.mxu0 0.0
        %571 = vmatprep.subr.mxu0 0.0
        %572 = vmatpush1.msra.mxu0 0.0
        %573 = vmatprep.subr.mxu0 0.0
        %574 = vmatpush1.msra.mxu0 0.0
        %575 = vmatprep.subr.mxu0 0.0
        %576 = vmatpush1.msra.mxu0 0.0
        %577 = vmatprep.subr.mxu0 0.0
        %578 = vmatpush1.msra.mxu0 0.0
        %579 = vmatprep.subr.mxu0 0.0
        %580 = vmatpush1.msra.mxu0 0.0
        %581 = vmatprep.subr.mxu0 0.0
        %582 = vmatpush1.msra.mxu0 0.0
        %583 = vmatprep.subr.mxu0 0.0
        %584 = vmatpush1.msra.mxu0 0.0
        %585 = vmatprep.subr.mxu0 0.0
        %586 = vmatpush1.msra.mxu0 0.0
        %587 = vmatprep.subr.mxu0 0.0
        %588 = vmatpush1.msra.mxu0 0.0
        %589 = vmatprep.mubr.f32.mxu0 0.0
        %590 = vmatmul.mubr.f32.gmra.mrb[0].mxu0 %v523
        %v591 = vpop.f32.mrb[0].mxu0
        %v592 = vadd.f32 0.0, %v591
        %v593 = vpop.f32.mrb[0].mxu0
        %594 = vdwg.mxu0
        %595 = vset.pattern.permute.xlu0 1
        %596 = vperm.xlu0 %595, %v429
        %v597 = vpop.permute.xlu0 %596
        %v599 = vmul.f32 %v597, %v592
        %v600 = vsel %vm259, %v599, 0.0
        %v601 = vrot.slane %v600, 4
        %v602 = vadd.f32 %v600, %v601
        %v603 = vrot.slane %v602, 2
        %v604 = vadd.f32 %v602, %v603
        %v605 = vrot.slane %v604, 1
        %v606 = vadd.f32 %v604, %v605
        %v607 = vadd.f32 %v517, %v606
        %v608 = vld [vmem:[%s4] sm:$0x1]
        %s609 = scalar_lea.vmem %s4, 1
        %v610 = vld [vmem:[%s609] sm:$0x1]
        %s611 = scalar_lea.vmem %s4, 2
        %v612 = vld [vmem:[%s611] sm:$0x1]
        %v613 = vadd.f32 %v607, %v608
        %vm614 = vcmask 253952
        %v615 = vsel %vm614, %v613, 0.0
        %616 = vadd.xlane.f32.xlu0 %v615
        %v617 = vpop.xlane.xlu0 %616
        %v618 = vrcp.pop 32.0
        %v619 = vmul.f32 %v617, %v618
        %v620 = vsub.f32 %v613, %v619
        %v621 = vmul.f32 %v620, %v620
        %v622 = vsel %vm614, %v621, 0.0
        %623 = vadd.xlane.f32.xlu0 %v622
        %v624 = vpop.xlane.xlu0 %623
        %v625 = vmul.f32 %v624, %v618
        %v626 = vadd.f32 %v625, 1e-06
        %v627 = vrsqrt.pop %v626
        %v628 = vmul.f32 %v620, %v627
        %v629 = vmul.f32 %v628, %v610
        %v630 = vadd.f32 %v629, %v612
        %631 = vst.msk [vmem:[%s253] sm:$0x1] %vm614, %v630
        %s632 = sand.u32 %s141, 1
        %s633 = scalar_lea.sflag [#allocation4], %s632
        %s634 = sand.u32 %s141, 1
        %s635 = scalar_lea.vmem [#allocation7], %s634
        // Predicated region
        $region49: #{tpu_custom_call.1} parent=39 // pred_check
          %p636 = pneg %p151
        $region50: #{tpu_custom_call.1} parent=39 // pred_check_branch
          %638 = sbr.rel (%p636) target = $region52
        $region51: #{tpu_custom_call.1} parent=39 // pred_region
          %s640 = ssub.s32 16, 16
          %641 = vsyncadd %s633, %s640
          %s642 = smul.addr %s23, 16
          %s643 = scalar_lea.hbm %s5, %s642
          %s645 = sshll.u32 %s635, 4
          %s646 = int_to_ptr.vmem [resolvable:$true] %s645
          %648 = dma.vmem_to_hbm [thread:$0]  %s646, 16, %s643, %s633
        $region52: #{tpu_custom_call.1} parent=39 // pred_fallthru
          _
      $region40: #{tpu_custom_call.1} parent=5 // pred_fallthru
        _
      %p649 = scmp.le.s32.totalorder 2, %s18
      // Predicated region
      $region53: #{tpu_custom_call.1} parent=5 // pred_check
        %p650 = pneg %p649
      $region54: #{tpu_custom_call.1} parent=5 // pred_check_branch
        %652 = sbr.rel (%p650) target = $region56
      $region55: #{tpu_custom_call.1} parent=5 // pred_region
        %s653 = ssub.s32 %s18, 2
        // Predicated region
        $region57: #{tpu_custom_call.1} parent=55 // pred_check
          %p654 = pneg %p157
        $region58: #{tpu_custom_call.1} parent=55 // pred_check_branch
          %656 = sbr.rel (%p654) target = $region60
        $region59: #{tpu_custom_call.1} parent=55 // pred_region
          %s657 = sand.u32 %s142, 1
          %s658 = scalar_lea.sflag [#allocation4], %s657
          %s659 = sand.u32 %s142, 1
          %s660 = scalar_lea.vmem [#allocation7], %s659
          %661 = dma.done %s658, 16
        $region60: #{tpu_custom_call.1} parent=55 // pred_fallthru
          _
      $region56: #{tpu_custom_call.1} parent=5 // pred_fallthru
        _
    $region6: #{tpu_custom_call.1} parent=1 // loop_footer
      %s22 = sadd.s32 1, %s18
    $region7: #{tpu_custom_call.1} parent=1 // loop_footer_branch
      %17 = sbr.rel target = $region3
    $region8: #{tpu_custom_call.1} parent=1 // loop_exit
      _
    %662 = vsyncpa [#allocation3], 1
    %s663 = scalar_lea.sflag [#allocation3], 1
    %664 = vsyncpa %s663, 1
    %665 = vsyncpa [#allocation6], 1
    %666 = vsyncpa [#allocation4], 1
    %s667 = scalar_lea.sflag [#allocation4], 1
    %668 = vsyncpa %s667, 1

</llo_original>
